<compile_context>
chip_gen: v6e
topology: v6e:2x2x1
jax: 0.10.0
libtpu: 0.0.40
codegen_flags: <defaults>
</compile_context>

<pallas_src>
import functools

import jax
import jax.numpy as jnp
from jax.experimental import pallas as pl
from jax.experimental.pallas import tpu as pltpu


# ---------------------------------------------------------------------------
# Kernel
# ---------------------------------------------------------------------------
def _pooling_layer_kernel(
    x_ref,                      # [block_b * S, D]  bf16, lane-dense 2-D view
    wkv_ref, bkv_ref,           # [D, D+H] bf16 , [1, D+H] f32   fused [Wv | Wk]
    wf_ref, bf_ref,             # [D, D]  bf16 (rows head-major permuted), [1, D]
    gamma_ref, beta_ref,        # [1, D], [1, D] f32   LayerNorm affine
    w1_ref, b1_ref,             # [D, F] bf16, [1, F] f32
    w2_ref, b2_ref,             # [F, D] bf16, [1, D] f32
    out_ref,                    # [block_b, D]
    *,
    block_b: int,
    seq_len: int,
    heads: int,
    dim_per_head: int,
    eps: float,
):
    D = heads * dim_per_head
    x = x_ref[...]                                                     # [bS, D] bf16

    # ------------- MultiHeadedPooling (mask=None, dropout=identity) ----------
    # One fused lane-dense MXU pass for linear_values | linear_keys.
    proj = (
        jnp.dot(x, wkv_ref[...], preferred_element_type=jnp.float32)
        + bkv_ref[...]
    )                                                                  # [bS, D+H] f32
    # Values slice starts at lane 0 (aligned); scores slice is tiny.
    # Leading-dim split is a pure view when seq_len is a multiple of 8.
    values = proj[:, :D].reshape(block_b, seq_len, D)                  # [b, S, D]
    scores = proj[:, D:D + heads].reshape(block_b, seq_len, heads)     # [b, S, H]

    # Softmax over the sequence axis, per head; normalization deferred to the
    # pooled [b, D] result (EUP reciprocal, far less elementwise work).
    scores = scores - jnp.max(scores, axis=1, keepdims=True)
    p = jnp.exp(scores)                                                # [b, S, H]
    inv = pl.reciprocal(jnp.sum(p, axis=1, keepdims=True), approx=True)  # [b,1,H]
    # TODO(synk): attention dropout (p=0.1) omitted — identity in eval mode.

    # Head-major weighted pooling over the sequence.  torch's (dph, head)
    # "unshape" interleave is folded into Wf's rows in the wrapper, so the
    # kernel stays layout-clean.
    if heads == 1:
        p_full = p                                                     # [b, S, 1]
        inv_full = inv[:, 0, :]                                        # [b, 1]
    else:
        p_full = jnp.concatenate(
            [jnp.broadcast_to(p[:, :, h:h + 1],
                              (block_b, seq_len, dim_per_head))
             for h in range(heads)],
            axis=-1,
        )                                                              # [b, S, D]
        inv_full = jnp.concatenate(
            [jnp.broadcast_to(inv[:, 0, h:h + 1], (block_b, dim_per_head))
             for h in range(heads)],
            axis=-1,
        )                                                              # [b, D]
    context = jnp.sum(p_full * values, axis=1) * inv_full              # [b, D] f32

    # final_linear (rows of Wf pre-permuted for the head-major context).
    context = (
        jnp.dot(context.astype(wf_ref.dtype), wf_ref[...],
                preferred_element_type=jnp.float32)
        + bf_ref[...]
    )                                                                  # [b, D] f32
    # TODO(synk): TransformerPoolingLayer.dropout (p=0.1) omitted — eval mode.

    # ------------- PositionwiseFeedForward (pre-LN, residual) ----------------
    mu = jnp.mean(context, axis=-1, keepdims=True)
    var = jnp.mean(jnp.square(context - mu), axis=-1, keepdims=True)
    xn = (context - mu) * jax.lax.rsqrt(var + eps)
    xn = xn * gamma_ref[...] + beta_ref[...]

    h1 = (
        jnp.dot(xn.astype(w1_ref.dtype), w1_ref[...],
                preferred_element_type=jnp.float32)
        + b1_ref[...]
    )
    h1 = jnp.maximum(h1, 0.0)                                          # ReLU
    y = (
        jnp.dot(h1.astype(w2_ref.dtype), w2_ref[...],
                preferred_element_type=jnp.float32)
        + b2_ref[...]
    )
    # TODO(synk): FFN dropout_1 / dropout_2 (p=0.1) omitted — eval mode.

    out_ref[...] = (y + context).astype(out_ref.dtype)


# ---------------------------------------------------------------------------
# Wrapper
# ---------------------------------------------------------------------------
def transformer_pooling_forward(x, params, *, heads, eps=1e-6, block_b=None,
                                mxu_dtype=jnp.bfloat16, min_grid_steps=2):
    """x: [B, S, D].  params: 12 weight/bias arrays (see kernel signature order
    in the __main__ block).  Returns [B, D] — TransformerPoolingLayer.forward
    (inputs, mask=None) in eval mode."""
    # TODO(synk): optional `mask` argument of MultiHeadedPooling not implemented.
    (wk, bk, wv, bv, wf, bf, gamma, beta, w1, b1, w2, b2) = params
    B, S, D = x.shape
    assert D % heads == 0
    H = heads
    dph = D // H
    Fd = w1.shape[1]
    mxu_bytes = jnp.dtype(mxu_dtype).itemsize

    # ----- one-time host-side parameter prep --------------------------------
    # Fused [values | keys] projection weight; values occupy lanes [0, D).
    wkv = jnp.concatenate([wv, wk], axis=1).astype(mxu_dtype)          # [D, D+H]
    bkv = jnp.concatenate([bv, bk], axis=1).astype(jnp.float32)        # [1, D+H]
    # Fold torch's unshape() (dph, head)-interleave into Wf's rows so the
    # kernel keeps a head-major pooled context (identity when heads == 1).
    perm = jnp.arange(D).reshape(dph, H).T.reshape(-1)
    wf_k = wf[perm, :].astype(mxu_dtype)
    w1_k = w1.astype(mxu_dtype)
    w2_k = w2.astype(mxu_dtype)
    bf_k = bf.astype(jnp.float32)
    b1_k = b1.astype(jnp.float32)
    b2_k = b2.astype(jnp.float32)
    gamma_k = gamma.astype(jnp.float32)
    beta_k = beta.astype(jnp.float32)

    # Lane-dense 2-D bf16 view for the projection matmul (free reshape, halves
    # the dominant HBM->VMEM DMA bytes).
    x2 = x.reshape(B * S, D).astype(mxu_dtype)

    # ----- VMEM-budget-driven batch tiling -----------------------------------
    try:
        vmem_cap = int(pltpu.get_tpu_info().vmem_capacity_bytes)
    except Exception:
        vmem_cap = 64 * 2**20                      # conservative (v7x per-TC)
    budget = int(min(vmem_cap, 128 * 2**20) * 0.45)   # headroom for Mosaic scratch
    # Weights are double-buffered by the pipeline even though constant.
    weight_bytes = (2 * mxu_bytes * (D * (D + H) + D * D + 2 * D * Fd)
                    + 2 * 4 * (D + H + 4 * D + Fd))
    # Per batch row: double-buffered bf16 x tile + f32 in-kernel temporaries.
    per_row = 2 * S * D * mxu_bytes + 8 * S * (D + H) * 4 + 8 * D * 4
    max_rows = max(1, (budget - weight_bytes) // per_row)

    if block_b is None:
        divs = [d for d in range(1, B + 1) if B % d == 0]
        # Keep blocks either full-extent or sublane-aligned (8|block_b).
        valid = [d for d in divs if d == B or d % 8 == 0]
        cap = max_rows
        if B >= 16 and min_grid_steps > 1:
            # >= 2 grid steps so both v7x TensorCores get work; one extra
            # pipeline step (~0.35us) is noise on single-core v5e/v6e.
            cap = min(cap, max(1, B // min_grid_steps))
        choices = ([d for d in valid if d <= cap]
                   or [d for d in valid if d <= max_rows]
                   or [min(valid)])
        block_b = max(choices)
    assert B % block_b == 0, "batch must divide evenly into batch blocks"
    grid = (B // block_b,)

    vmem_limit = int(min(vmem_cap * 0.9, 100 * 2**20))

    # ----- advisory cost estimate --------------------------------------------
    flops = (2 * B * S * D * (D + H)          # fused keys/values projection
             + 2 * B * D * D                  # final_linear
             + 4 * B * D * Fd)                # FFN w_1 + w_2
    transcendentals = B * S * H + B * H + B   # exp + reciprocal + rsqrt
    bytes_accessed = (x2.size * mxu_bytes
                      + (wkv.size + wf_k.size + w1_k.size + w2_k.size) * mxu_bytes
                      + 4 * (bkv.size + bf_k.size + b1_k.size + b2_k.size
                             + gamma_k.size + beta_k.size)
                      + B * D * jnp.dtype(x.dtype).itemsize)
    cost = pl.CostEstimate(flops=int(flops),
                           transcendentals=int(transcendentals),
                           bytes_accessed=int(bytes_accessed))

    kernel = functools.partial(
        _pooling_layer_kernel,
        block_b=block_b, seq_len=S, heads=H, dim_per_head=dph, eps=eps,
    )

    def full(a):
        # Whole weight resident in VMEM; same block every grid step (no re-DMA).
        nd = a.ndim
        return pl.BlockSpec(a.shape, lambda i, _nd=nd: (0,) * _nd)

    return pl.pallas_call(
        kernel,
        out_shape=jax.ShapeDtypeStruct((B, D), x.dtype),
        grid=grid,
        in_specs=[
            pl.BlockSpec((block_b * S, D), lambda i: (i, 0)),   # inputs batch tile
            full(wkv), full(bkv),
            full(wf_k), full(bf_k),
            full(gamma_k), full(beta_k),
            full(w1_k), full(b1_k),
            full(w2_k), full(b2_k),
        ],
        out_specs=pl.BlockSpec((block_b, D), lambda i: (i, 0)),
        compiler_params=pltpu.CompilerParams(
            dimension_semantics=("parallel",),
            vmem_limit_bytes=vmem_limit,
        ),
        cost_estimate=cost,
    )(x2, wkv, bkv, wf_k, bf_k, gamma_k, beta_k, w1_k, b1_k, w2_k, b2_k)


# ---------------------------------------------------------------------------
# Pure-JAX reference (mirrors the PyTorch forward exactly, f32, eval mode)
# ---------------------------------------------------------------------------
def reference_forward(x, params, *, heads, eps=1e-6):
    (wk, bk, wv, bv, wf, bf, gamma, beta, w1, b1, w2, b2) = params
    B, S, D = x.shape
    dph = D // heads

    scores = x @ wk + bk[0]                                            # [B,S,H]
    values = x @ wv + bv[0]                                            # [B,S,D]
    scores = jnp.transpose(scores.reshape(B, S, heads, 1), (0, 2, 1, 3))[..., 0]
    values = jnp.transpose(values.reshape(B, S, heads, dph), (0, 2, 1, 3))
    attn = jax.nn.softmax(scores, axis=-1)                             # [B,H,S]
    pooled = jnp.sum(attn[..., None] * values, axis=-2)                # [B,H,dph]
    # torch unshape() applied to the 3-D pooled tensor: transpose(1,2) + view
    context = jnp.transpose(pooled, (0, 2, 1)).reshape(B, heads * dph)
    context = context @ wf + bf[0]                                     # [B,D]

    mu = context.mean(-1, keepdims=True)
    var = ((context - mu) ** 2).mean(-1, keepdims=True)
    xn = (context - mu) / jnp.sqrt(var + eps) * gamma[0] + beta[0]
    h1 = jax.nn.relu(xn @ w1 + b1[0])
    y = h1 @ w2 + b2[0]
    return y + context


# ---------------------------------------------------------------------------
if __name__ == "__main__":
    root = jax.random.PRNGKey(0)
    case_keys = jax.random.split(root, 2)

    def run_case(case_key, B, S, d_model, heads, d_ff):
        ks = jax.random.split(case_key, 13)

        def rnd(k, shape, scale=0.2):
            return scale * jax.random.normal(k, shape, dtype=jnp.float32)

        x = jax.random.normal(ks[0], (B, S, d_model), dtype=jnp.float32)
        params = (
            rnd(ks[1], (d_model, heads)),                 # Wk  (x @ Wk)
            rnd(ks[2], (1, heads)),                       # bk
            rnd(ks[3], (d_model, d_model)),               # Wv
            rnd(ks[4], (1, d_model)),                     # bv
            rnd(ks[5], (d_model, d_model)),               # Wf (final_linear)
            rnd(ks[6], (1, d_model)),                     # bf
            1.0 + rnd(ks[7], (1, d_model), 0.1),          # LayerNorm gamma
            rnd(ks[8], (1, d_model), 0.1),                # LayerNorm beta
            rnd(ks[9], (d_model, d_ff)),                  # W1
            rnd(ks[10], (1, d_ff)),                       # b1
            rnd(ks[11], (d_ff, d_model)),                 # W2
            rnd(ks[12], (1, d_model), 0.1),               # b2
        )

        out = jax.block_until_ready(
            transformer_pooling_forward(x, params, heads=heads)
        )
        ref = reference_forward(x, params, heads=heads)
        assert out.shape == (B, d_model)
        # bf16 MXU operands + approx reciprocal vs f32 reference -> loose tol.
        err = float(jnp.max(jnp.abs(out - ref)))
        assert jnp.allclose(out, ref, atol=5e-2, rtol=5e-2), err

    # Module config from the spec: d_model=16, heads=1, d_ff=16.
    run_case(case_keys[0], B=2, S=8, d_model=16, heads=1, d_ff=16)
    # Multi-head path + 2 parallel grid steps (exercises head-major pooling,
    # Wf row permutation and the batch-tiled grid).
    run_case(case_keys[1], B=16, S=8, d_model=16, heads=4, d_ff=16)

    print("KERNEL_OK")
</pallas_src>

<mosaic_0001>
module attributes {stable_mosaic.version = 11 : i64} {
  func.func @_pooling_layer_kernel(%arg0: i32, %arg1: memref<16x16xbf16, #tpu.memory_space<vmem>>, %arg2: memref<16x17xbf16, #tpu.memory_space<vmem>>, %arg3: memref<1x17xf32, #tpu.memory_space<vmem>>, %arg4: memref<16x16xbf16, #tpu.memory_space<vmem>>, %arg5: memref<1x16xf32, #tpu.memory_space<vmem>>, %arg6: memref<1x16xf32, #tpu.memory_space<vmem>>, %arg7: memref<1x16xf32, #tpu.memory_space<vmem>>, %arg8: memref<16x16xbf16, #tpu.memory_space<vmem>>, %arg9: memref<1x16xf32, #tpu.memory_space<vmem>>, %arg10: memref<16x16xbf16, #tpu.memory_space<vmem>>, %arg11: memref<1x16xf32, #tpu.memory_space<vmem>>, %arg12: memref<2x16xf32, #tpu.memory_space<vmem>>) attributes {dimension_semantics = [#tpu.dimension_semantics<parallel>], iteration_bounds = array<i64: 1>, scalar_prefetch = 0 : i64, scratch_operands = 0 : i64, tpu.core_type = #tpu.core_type<tc>, window_params = [{transform_indices = @transform_0, window_bounds = array<i64: 16, 16>}, {pipeline_mode = #tpu.pipeline_mode<synchronous>, transform_indices = @transform_1, window_bounds = array<i64: 16, 17>}, {pipeline_mode = #tpu.pipeline_mode<synchronous>, transform_indices = @transform_2, window_bounds = array<i64: 1, 17>}, {pipeline_mode = #tpu.pipeline_mode<synchronous>, transform_indices = @transform_3, window_bounds = array<i64: 16, 16>}, {pipeline_mode = #tpu.pipeline_mode<synchronous>, transform_indices = @transform_4, window_bounds = array<i64: 1, 16>}, {pipeline_mode = #tpu.pipeline_mode<synchronous>, transform_indices = @transform_5, window_bounds = array<i64: 1, 16>}, {pipeline_mode = #tpu.pipeline_mode<synchronous>, transform_indices = @transform_6, window_bounds = array<i64: 1, 16>}, {pipeline_mode = #tpu.pipeline_mode<synchronous>, transform_indices = @transform_7, window_bounds = array<i64: 16, 16>}, {pipeline_mode = #tpu.pipeline_mode<synchronous>, transform_indices = @transform_8, window_bounds = array<i64: 1, 16>}, {pipeline_mode = #tpu.pipeline_mode<synchronous>, transform_indices = @transform_9, window_bounds = array<i64: 16, 16>}, {pipeline_mode = #tpu.pipeline_mode<synchronous>, transform_indices = @transform_10, window_bounds = array<i64: 1, 16>}, {transform_indices = @transform_11, window_bounds = array<i64: 2, 16>}]} {
    %c0 = arith.constant 0 : index
    %c0_0 = arith.constant 0 : index
    %0 = vector.load %arg1[%c0, %c0_0] : memref<16x16xbf16, #tpu.memory_space<vmem>>, vector<16x16xbf16>
    %c0_1 = arith.constant 0 : index
    %c0_2 = arith.constant 0 : index
    %1 = vector.load %arg2[%c0_1, %c0_2] : memref<16x17xbf16, #tpu.memory_space<vmem>>, vector<16x17xbf16>
    %cst = arith.constant dense<0.000000e+00> : vector<16x17xf32>
    %2 = tpu.matmul %0, %1, %cst {dimension_numbers = #tpu.dot_dimension_numbers<[1], [0], [0], [1], [0, 0, 1, 1], [], []>} : vector<16x16xbf16>, vector<16x17xbf16>, vector<16x17xf32> -> vector<16x17xf32>
    %c0_3 = arith.constant 0 : index
    %c0_4 = arith.constant 0 : index
    %3 = vector.load %arg3[%c0_3, %c0_4] : memref<1x17xf32, #tpu.memory_space<vmem>>, vector<1x17xf32>
    %4 = vector.broadcast %3 : vector<1x17xf32> to vector<16x17xf32>
    %5 = arith.addf %2, %4 : vector<16x17xf32>
    %6 = vector.extract_strided_slice %5 {offsets = [0, 0], sizes = [16, 16], strides = [1, 1]} : vector<16x17xf32> to vector<16x16xf32>
    %7 = vector.shape_cast %6 : vector<16x16xf32> to vector<2x8x16xf32>
    %8 = vector.extract_strided_slice %5 {offsets = [0, 16], sizes = [16, 1], strides = [1, 1]} : vector<16x17xf32> to vector<16x1xf32>
    %9 = vector.shape_cast %8 : vector<16x1xf32> to vector<2x8x1xf32>
    %cst_5 = arith.constant dense<0xFF800000> : vector<2x1xf32>
    %10 = vector.multi_reduction <maximumf>, %9, %cst_5 [1] : vector<2x8x1xf32> to vector<2x1xf32>
    %11 = vector.shape_cast %10 : vector<2x1xf32> to vector<2x1x1xf32>
    %12 = vector.broadcast %11 : vector<2x1x1xf32> to vector<2x8x1xf32>
    %13 = arith.subf %9, %12 : vector<2x8x1xf32>
    %14 = math.exp %13 : vector<2x8x1xf32>
    %cst_6 = arith.constant dense<0.000000e+00> : vector<2x1xf32>
    %15 = vector.multi_reduction <add>, %14, %cst_6 [1] : vector<2x8x1xf32> to vector<2x1xf32>
    %16 = vector.shape_cast %15 : vector<2x1xf32> to vector<2x1x1xf32>
    %17 = tpu.reciprocal %16 {approx = true} : vector<2x1x1xf32> -> vector<2x1x1xf32>
    %18 = vector.shape_cast %17 : vector<2x1x1xf32> to vector<2x1xf32>
    %19 = vector.broadcast %14 : vector<2x8x1xf32> to vector<2x8x16xf32>
    %20 = arith.mulf %19, %7 : vector<2x8x16xf32>
    %cst_7 = arith.constant dense<0.000000e+00> : vector<2x16xf32>
    %21 = vector.multi_reduction <add>, %20, %cst_7 [1] : vector<2x8x16xf32> to vector<2x16xf32>
    %22 = vector.broadcast %18 : vector<2x1xf32> to vector<2x16xf32>
    %23 = arith.mulf %21, %22 : vector<2x16xf32>
    %24 = arith.truncf %23 : vector<2x16xf32> to vector<2x16xbf16>
    %c0_8 = arith.constant 0 : index
    %c0_9 = arith.constant 0 : index
    %25 = vector.load %arg4[%c0_8, %c0_9] : memref<16x16xbf16, #tpu.memory_space<vmem>>, vector<16x16xbf16>
    %cst_10 = arith.constant dense<0.000000e+00> : vector<2x16xf32>
    %26 = tpu.matmul %24, %25, %cst_10 {dimension_numbers = #tpu.dot_dimension_numbers<[1], [0], [0], [1], [0, 0, 1, 1], [], []>} : vector<2x16xbf16>, vector<16x16xbf16>, vector<2x16xf32> -> vector<2x16xf32>
    %c0_11 = arith.constant 0 : index
    %c0_12 = arith.constant 0 : index
    %27 = vector.load %arg5[%c0_11, %c0_12] : memref<1x16xf32, #tpu.memory_space<vmem>>, vector<1x16xf32>
    %28 = vector.broadcast %27 : vector<1x16xf32> to vector<2x16xf32>
    %29 = arith.addf %26, %28 : vector<2x16xf32>
    %cst_13 = arith.constant dense<0.000000e+00> : vector<2xf32>
    %30 = vector.multi_reduction <add>, %29, %cst_13 [1] : vector<2x16xf32> to vector<2xf32>
    %31 = vector.shape_cast %30 : vector<2xf32> to vector<2x1xf32>
    %cst_14 = arith.constant 1.600000e+01 : f32
    %32 = vector.broadcast %cst_14 : f32 to vector<2x1xf32>
    %33 = arith.divf %31, %32 : vector<2x1xf32>
    %34 = vector.broadcast %33 : vector<2x1xf32> to vector<2x16xf32>
    %35 = arith.subf %29, %34 : vector<2x16xf32>
    %36 = arith.mulf %35, %35 : vector<2x16xf32>
    %cst_15 = arith.constant dense<0.000000e+00> : vector<2xf32>
    %37 = vector.multi_reduction <add>, %36, %cst_15 [1] : vector<2x16xf32> to vector<2xf32>
    %38 = vector.shape_cast %37 : vector<2xf32> to vector<2x1xf32>
    %cst_16 = arith.constant 1.600000e+01 : f32
    %39 = vector.broadcast %cst_16 : f32 to vector<2x1xf32>
    %40 = arith.divf %38, %39 : vector<2x1xf32>
    %41 = vector.broadcast %33 : vector<2x1xf32> to vector<2x16xf32>
    %42 = arith.subf %29, %41 : vector<2x16xf32>
    %cst_17 = arith.constant 9.99999997E-7 : f32
    %43 = vector.broadcast %cst_17 : f32 to vector<2x1xf32>
    %44 = arith.addf %40, %43 : vector<2x1xf32>
    %45 = math.rsqrt %44 : vector<2x1xf32>
    %46 = vector.broadcast %45 : vector<2x1xf32> to vector<2x16xf32>
    %47 = arith.mulf %42, %46 : vector<2x16xf32>
    %c0_18 = arith.constant 0 : index
    %c0_19 = arith.constant 0 : index
    %48 = vector.load %arg6[%c0_18, %c0_19] : memref<1x16xf32, #tpu.memory_space<vmem>>, vector<1x16xf32>
    %49 = vector.broadcast %48 : vector<1x16xf32> to vector<2x16xf32>
    %50 = arith.mulf %47, %49 : vector<2x16xf32>
    %c0_20 = arith.constant 0 : index
    %c0_21 = arith.constant 0 : index
    %51 = vector.load %arg7[%c0_20, %c0_21] : memref<1x16xf32, #tpu.memory_space<vmem>>, vector<1x16xf32>
    %52 = vector.broadcast %51 : vector<1x16xf32> to vector<2x16xf32>
    %53 = arith.addf %50, %52 : vector<2x16xf32>
    %54 = arith.truncf %53 : vector<2x16xf32> to vector<2x16xbf16>
    %c0_22 = arith.constant 0 : index
    %c0_23 = arith.constant 0 : index
    %55 = vector.load %arg8[%c0_22, %c0_23] : memref<16x16xbf16, #tpu.memory_space<vmem>>, vector<16x16xbf16>
    %cst_24 = arith.constant dense<0.000000e+00> : vector<2x16xf32>
    %56 = tpu.matmul %54, %55, %cst_24 {dimension_numbers = #tpu.dot_dimension_numbers<[1], [0], [0], [1], [0, 0, 1, 1], [], []>} : vector<2x16xbf16>, vector<16x16xbf16>, vector<2x16xf32> -> vector<2x16xf32>
    %c0_25 = arith.constant 0 : index
    %c0_26 = arith.constant 0 : index
    %57 = vector.load %arg9[%c0_25, %c0_26] : memref<1x16xf32, #tpu.memory_space<vmem>>, vector<1x16xf32>
    %58 = vector.broadcast %57 : vector<1x16xf32> to vector<2x16xf32>
    %59 = arith.addf %56, %58 : vector<2x16xf32>
    %cst_27 = arith.constant 0.000000e+00 : f32
    %60 = vector.broadcast %cst_27 : f32 to vector<2x16xf32>
    %61 = arith.maximumf %59, %60 : vector<2x16xf32>
    %62 = arith.truncf %61 : vector<2x16xf32> to vector<2x16xbf16>
    %c0_28 = arith.constant 0 : index
    %c0_29 = arith.constant 0 : index
    %63 = vector.load %arg10[%c0_28, %c0_29] : memref<16x16xbf16, #tpu.memory_space<vmem>>, vector<16x16xbf16>
    %cst_30 = arith.constant dense<0.000000e+00> : vector<2x16xf32>
    %64 = tpu.matmul %62, %63, %cst_30 {dimension_numbers = #tpu.dot_dimension_numbers<[1], [0], [0], [1], [0, 0, 1, 1], [], []>} : vector<2x16xbf16>, vector<16x16xbf16>, vector<2x16xf32> -> vector<2x16xf32>
    %c0_31 = arith.constant 0 : index
    %c0_32 = arith.constant 0 : index
    %65 = vector.load %arg11[%c0_31, %c0_32] : memref<1x16xf32, #tpu.memory_space<vmem>>, vector<1x16xf32>
    %66 = vector.broadcast %65 : vector<1x16xf32> to vector<2x16xf32>
    %67 = arith.addf %64, %66 : vector<2x16xf32>
    %68 = arith.addf %67, %29 : vector<2x16xf32>
    %c0_33 = arith.constant 0 : index
    %c0_34 = arith.constant 0 : index
    %69 = vector.load %arg12[%c0_33, %c0_34] : memref<2x16xf32, #tpu.memory_space<vmem>>, vector<2x16xf32>
    tpu.vector_store %arg12[%c0_33, %c0_34], %68 {strides = array<i32>} : memref<2x16xf32, #tpu.memory_space<vmem>>, vector<2x16xf32>,
    return
  }
  func.func @transform_0(%arg0: i32) -> (i32, i32) {
    %c0_i32 = arith.constant 0 : i32
    %c0_i32_0 = arith.constant 0 : i32
    return %arg0, %c0_i32 : i32, i32
  }
  func.func @transform_1(%arg0: i32) -> (i32, i32) {
    %c0_i32 = arith.constant 0 : i32
    %c0_i32_0 = arith.constant 0 : i32
    %c0_i32_1 = arith.constant 0 : i32
    return %c0_i32, %c0_i32_0 : i32, i32
  }
  func.func @transform_2(%arg0: i32) -> (i32, i32) {
    %c0_i32 = arith.constant 0 : i32
    %c0_i32_0 = arith.constant 0 : i32
    %c0_i32_1 = arith.constant 0 : i32
    return %c0_i32, %c0_i32_0 : i32, i32
  }
  func.func @transform_3(%arg0: i32) -> (i32, i32) {
    %c0_i32 = arith.constant 0 : i32
    %c0_i32_0 = arith.constant 0 : i32
    %c0_i32_1 = arith.constant 0 : i32
    return %c0_i32, %c0_i32_0 : i32, i32
  }
  func.func @transform_4(%arg0: i32) -> (i32, i32) {
    %c0_i32 = arith.constant 0 : i32
    %c0_i32_0 = arith.constant 0 : i32
    %c0_i32_1 = arith.constant 0 : i32
    return %c0_i32, %c0_i32_0 : i32, i32
  }
  func.func @transform_5(%arg0: i32) -> (i32, i32) {
    %c0_i32 = arith.constant 0 : i32
    %c0_i32_0 = arith.constant 0 : i32
    %c0_i32_1 = arith.constant 0 : i32
    return %c0_i32, %c0_i32_0 : i32, i32
  }
  func.func @transform_6(%arg0: i32) -> (i32, i32) {
    %c0_i32 = arith.constant 0 : i32
    %c0_i32_0 = arith.constant 0 : i32
    %c0_i32_1 = arith.constant 0 : i32
    return %c0_i32, %c0_i32_0 : i32, i32
  }
  func.func @transform_7(%arg0: i32) -> (i32, i32) {
    %c0_i32 = arith.constant 0 : i32
    %c0_i32_0 = arith.constant 0 : i32
    %c0_i32_1 = arith.constant 0 : i32
    return %c0_i32, %c0_i32_0 : i32, i32
  }
  func.func @transform_8(%arg0: i32) -> (i32, i32) {
    %c0_i32 = arith.constant 0 : i32
    %c0_i32_0 = arith.constant 0 : i32
    %c0_i32_1 = arith.constant 0 : i32
    return %c0_i32, %c0_i32_0 : i32, i32
  }
  func.func @transform_9(%arg0: i32) -> (i32, i32) {
    %c0_i32 = arith.constant 0 : i32
    %c0_i32_0 = arith.constant 0 : i32
    %c0_i32_1 = arith.constant 0 : i32
    return %c0_i32, %c0_i32_0 : i32, i32
  }
  func.func @transform_10(%arg0: i32) -> (i32, i32) {
    %c0_i32 = arith.constant 0 : i32
    %c0_i32_0 = arith.constant 0 : i32
    %c0_i32_1 = arith.constant 0 : i32
    return %c0_i32, %c0_i32_0 : i32, i32
  }
  func.func @transform_11(%arg0: i32) -> (i32, i32) {
    %c0_i32 = arith.constant 0 : i32
    %c0_i32_0 = arith.constant 0 : i32
    return %arg0, %c0_i32 : i32, i32
  }
}

</mosaic_0001>

<llo_original>
// kernel: tpu_custom_call.1
$region0: #{tpu_custom_call.1}
  #allocation0 [shape = 'u32[]', space=smem, size = 0x4, offset = 0x4, fixed_abs, tag = 'smem constant byte address 0x4 - core index']
  #allocation1 [shape = 'u32[144,128]{1,0:T(1,128)}', space=vmem, size = 0x12000, scoped, tag = 'internal scratch']
  %s0 = inlined_call_operand.hbm [shape: bf16[16,16], index: 0, kind: input, shape index: {}]
  %s1 = inlined_call_operand.hbm [shape: bf16[16,17], index: 1, kind: input, shape index: {}]
  %s2 = inlined_call_operand.hbm [shape: f32[1,17], index: 2, kind: input, shape index: {}]
  %s3 = inlined_call_operand.hbm [shape: bf16[16,16], index: 3, kind: input, shape index: {}]
  %s4 = inlined_call_operand.hbm [shape: f32[1,16], index: 4, kind: input, shape index: {}]
  %s5 = inlined_call_operand.hbm [shape: f32[1,16], index: 5, kind: input, shape index: {}]
  %s6 = inlined_call_operand.hbm [shape: f32[1,16], index: 6, kind: input, shape index: {}]
  %s7 = inlined_call_operand.vmem [shape: bf16[16,16], index: 7, kind: input, shape index: {}]
  %s8 = inlined_call_operand.hbm [shape: f32[1,16], index: 8, kind: input, shape index: {}]
  %s9 = inlined_call_operand.vmem [shape: bf16[16,16], index: 9, kind: input, shape index: {}]
  %s10 = inlined_call_operand.vmem [shape: f32[1,16], index: 10, kind: input, shape index: {}]
  %s11 = inlined_call_operand.hbm [shape: f32[2,16], index: 11, kind: output, shape index: {}]
  %s12 = sld [smem:[#allocation0]]
  $region86: #{tpu_custom_call.1} parent=0
    _
  %s14 = ssub.s32 1, %s12
  %s15 = scalar_select 0, %s14, %s12
  $region1: #{tpu_custom_call.1} parent=0
    #allocation2 [shape = 'u8[4096]{0}', space=vmem, size = 0x1000, scoped, tag = 'input window, operand 0, single buffered']
    #allocation3 [shape = 's32[1]{0}', space=sflag, size = 0x4, scoped, tag = 'scoped memory for tpu_custom_call.1']
    #allocation4 [shape = 's32[1]{0}', space=sflag, size = 0x4, scoped, tag = 'scoped memory for tpu_custom_call.1']
    #allocation5 [shape = 'u8[4096]{0}', space=vmem, size = 0x1000, scoped, tag = 'input window, operand 1, single buffered']
    #allocation6 [shape = 's32[1]{0}', space=sflag, size = 0x4, scoped, tag = 'scoped memory for tpu_custom_call.1']
    #allocation7 [shape = 'u8[512]{0}', space=vmem, size = 0x400, scoped, tag = 'input window, operand 2, single buffered']
    #allocation8 [shape = 'u8[4096]{0}', space=vmem, size = 0x1000, scoped, tag = 'input window, operand 3, single buffered']
    #allocation9 [shape = 's32[1]{0}', space=sflag, size = 0x4, scoped, tag = 'scoped memory for tpu_custom_call.1']
    #allocation10 [shape = 'u8[512]{0}', space=vmem, size = 0x400, scoped, tag = 'input window, operand 4, single buffered']
    #allocation11 [shape = 'u8[512]{0}', space=vmem, size = 0x400, scoped, tag = 'input window, operand 5, single buffered']
    #allocation12 [shape = 's32[1]{0}', space=sflag, size = 0x4, scoped, tag = 'scoped memory for tpu_custom_call.1']
    #allocation13 [shape = 'u8[512]{0}', space=vmem, size = 0x400, scoped, tag = 'input window, operand 6, single buffered']
    #allocation14 [shape = 'u8[512]{0}', space=vmem, size = 0x400, scoped, tag = 'input window, operand 8, single buffered']
    #allocation15 [shape = 's32[1]{0}', space=sflag, size = 0x4, scoped, tag = 'scoped memory for tpu_custom_call.1']
    #allocation16 [shape = 'u8[1024]{0}', space=vmem, size = 0x400, scoped, tag = 'output window, operand 0, single buffered']
    %16 = vsyncpa [#allocation3], 0
    %17 = vsyncpa [#allocation6], 0
    %18 = vsyncpa [#allocation9], 0
    %19 = vsyncpa [#allocation12], 0
    %20 = vsyncpa [#allocation15], 0
    %21 = vsyncpa [#allocation4], 0
    // Predicated region
    $region2: #{tpu_custom_call.1} parent=1 // pred_check
      _
    $region3: #{tpu_custom_call.1} parent=1 // pred_check_branch
      %23 = sbr.rel (0) target = $region5
    $region4: #{tpu_custom_call.1} parent=1 // pred_region
      %s25 = ssub.s32 128, 128
      %26 = vsyncadd [#allocation3], %s25
      %s27 = sshll.u32 [#allocation2], 4
      %s28 = int_to_ptr.vmem [resolvable:$true] %s27
      %33 = dma.hbm_to_vmem [thread:$0]  %s0, 128, %s28, [#allocation3], 64, 64, 4
    $region5: #{tpu_custom_call.1} parent=1 // pred_fallthru
      _
    // Predicated region
    $region6: #{tpu_custom_call.1} parent=1 // pred_check
      _
    $region7: #{tpu_custom_call.1} parent=1 // pred_check_branch
      %35 = sbr.rel (0) target = $region9
    $region8: #{tpu_custom_call.1} parent=1 // pred_region
      %s37 = ssub.s32 128, 128
      %38 = vsyncadd [#allocation6], %s37
      %s39 = sshll.u32 [#allocation5], 4
      %s40 = int_to_ptr.vmem [resolvable:$true] %s39
      %45 = dma.hbm_to_vmem [thread:$0]  %s1, 128, %s40, [#allocation6], 64, 64, 4
    $region9: #{tpu_custom_call.1} parent=1 // pred_fallthru
      _
    // Predicated region
    $region10: #{tpu_custom_call.1} parent=1 // pred_check
      _
    $region11: #{tpu_custom_call.1} parent=1 // pred_check_branch
      %47 = sbr.rel (0) target = $region13
    $region12: #{tpu_custom_call.1} parent=1 // pred_region
      %s49 = ssub.s32 16, 16
      %50 = vsyncadd [#allocation6], %s49
      %s52 = sshll.u32 [#allocation7], 4
      %s53 = int_to_ptr.vmem [resolvable:$true] %s52
      %55 = dma.hbm_to_vmem [thread:$0]  %s2, 16, %s53, [#allocation6]
    $region13: #{tpu_custom_call.1} parent=1 // pred_fallthru
      _
    // Predicated region
    $region14: #{tpu_custom_call.1} parent=1 // pred_check
      _
    $region15: #{tpu_custom_call.1} parent=1 // pred_check_branch
      %57 = sbr.rel (0) target = $region17
    $region16: #{tpu_custom_call.1} parent=1 // pred_region
      %s59 = ssub.s32 128, 128
      %60 = vsyncadd [#allocation9], %s59
      %s61 = sshll.u32 [#allocation8], 4
      %s62 = int_to_ptr.vmem [resolvable:$true] %s61
      %67 = dma.hbm_to_vmem [thread:$0]  %s3, 128, %s62, [#allocation9], 64, 64, 4
    $region17: #{tpu_custom_call.1} parent=1 // pred_fallthru
      _
    // Predicated region
    $region18: #{tpu_custom_call.1} parent=1 // pred_check
      _
    $region19: #{tpu_custom_call.1} parent=1 // pred_check_branch
      %69 = sbr.rel (0) target = $region21
    $region20: #{tpu_custom_call.1} parent=1 // pred_region
      %s71 = ssub.s32 16, 16
      %72 = vsyncadd [#allocation9], %s71
      %s74 = sshll.u32 [#allocation10], 4
      %s75 = int_to_ptr.vmem [resolvable:$true] %s74
      %77 = dma.hbm_to_vmem [thread:$0]  %s4, 16, %s75, [#allocation9]
    $region21: #{tpu_custom_call.1} parent=1 // pred_fallthru
      _
    // Predicated region
    $region22: #{tpu_custom_call.1} parent=1 // pred_check
      _
    $region23: #{tpu_custom_call.1} parent=1 // pred_check_branch
      %79 = sbr.rel (0) target = $region25
    $region24: #{tpu_custom_call.1} parent=1 // pred_region
      %s81 = ssub.s32 16, 16
      %82 = vsyncadd [#allocation12], %s81
      %s84 = sshll.u32 [#allocation11], 4
      %s85 = int_to_ptr.vmem [resolvable:$true] %s84
      %87 = dma.hbm_to_vmem [thread:$0]  %s5, 16, %s85, [#allocation12]
    $region25: #{tpu_custom_call.1} parent=1 // pred_fallthru
      _
    // Predicated region
    $region26: #{tpu_custom_call.1} parent=1 // pred_check
      _
    $region27: #{tpu_custom_call.1} parent=1 // pred_check_branch
      %89 = sbr.rel (0) target = $region29
    $region28: #{tpu_custom_call.1} parent=1 // pred_region
      %s91 = ssub.s32 16, 16
      %92 = vsyncadd [#allocation12], %s91
      %s94 = sshll.u32 [#allocation13], 4
      %s95 = int_to_ptr.vmem [resolvable:$true] %s94
      %97 = dma.hbm_to_vmem [thread:$0]  %s6, 16, %s95, [#allocation12]
    $region29: #{tpu_custom_call.1} parent=1 // pred_fallthru
      _
    // Predicated region
    $region30: #{tpu_custom_call.1} parent=1 // pred_check
      _
    $region31: #{tpu_custom_call.1} parent=1 // pred_check_branch
      %99 = sbr.rel (0) target = $region33
    $region32: #{tpu_custom_call.1} parent=1 // pred_region
      _
    $region33: #{tpu_custom_call.1} parent=1 // pred_fallthru
      _
    // Predicated region
    $region34: #{tpu_custom_call.1} parent=1 // pred_check
      _
    $region35: #{tpu_custom_call.1} parent=1 // pred_check_branch
      %101 = sbr.rel (0) target = $region37
    $region36: #{tpu_custom_call.1} parent=1 // pred_region
      %s103 = ssub.s32 16, 16
      %104 = vsyncadd [#allocation15], %s103
      %s106 = sshll.u32 [#allocation14], 4
      %s107 = int_to_ptr.vmem [resolvable:$true] %s106
      %109 = dma.hbm_to_vmem [thread:$0]  %s8, 16, %s107, [#allocation15]
    $region37: #{tpu_custom_call.1} parent=1 // pred_fallthru
      _
    // Predicated region
    $region38: #{tpu_custom_call.1} parent=1 // pred_check
      _
    $region39: #{tpu_custom_call.1} parent=1 // pred_check_branch
      %111 = sbr.rel (0) target = $region41
    $region40: #{tpu_custom_call.1} parent=1 // pred_region
      _
    $region41: #{tpu_custom_call.1} parent=1 // pred_fallthru
      _
    // Predicated region
    $region42: #{tpu_custom_call.1} parent=1 // pred_check
      _
    $region43: #{tpu_custom_call.1} parent=1 // pred_check_branch
      %113 = sbr.rel (0) target = $region45
    $region44: #{tpu_custom_call.1} parent=1 // pred_region
      _
    $region45: #{tpu_custom_call.1} parent=1 // pred_fallthru
      _
    // Predicated region
    $region46: #{tpu_custom_call.1} parent=1 // pred_check
      _
    $region47: #{tpu_custom_call.1} parent=1 // pred_check_branch
      %115 = sbr.rel (0) target = $region49
    $region48: #{tpu_custom_call.1} parent=1 // pred_region
      %116 = dma.done [#allocation3], 128
    $region49: #{tpu_custom_call.1} parent=1 // pred_fallthru
      _
    // Predicated region
    $region50: #{tpu_custom_call.1} parent=1 // pred_check
      _
    $region51: #{tpu_custom_call.1} parent=1 // pred_check_branch
      %118 = sbr.rel (0) target = $region53
    $region52: #{tpu_custom_call.1} parent=1 // pred_region
      %119 = dma.done [#allocation6], 128
    $region53: #{tpu_custom_call.1} parent=1 // pred_fallthru
      _
    // Predicated region
    $region54: #{tpu_custom_call.1} parent=1 // pred_check
      _
    $region55: #{tpu_custom_call.1} parent=1 // pred_check_branch
      %121 = sbr.rel (0) target = $region57
    $region56: #{tpu_custom_call.1} parent=1 // pred_region
      %122 = dma.done [#allocation6], 16
    $region57: #{tpu_custom_call.1} parent=1 // pred_fallthru
      _
    // Predicated region
    $region58: #{tpu_custom_call.1} parent=1 // pred_check
      _
    $region59: #{tpu_custom_call.1} parent=1 // pred_check_branch
      %124 = sbr.rel (0) target = $region61
    $region60: #{tpu_custom_call.1} parent=1 // pred_region
      %125 = dma.done [#allocation9], 128
    $region61: #{tpu_custom_call.1} parent=1 // pred_fallthru
      _
    // Predicated region
    $region62: #{tpu_custom_call.1} parent=1 // pred_check
      _
    $region63: #{tpu_custom_call.1} parent=1 // pred_check_branch
      %127 = sbr.rel (0) target = $region65
    $region64: #{tpu_custom_call.1} parent=1 // pred_region
      %128 = dma.done [#allocation9], 16
    $region65: #{tpu_custom_call.1} parent=1 // pred_fallthru
      _
    // Predicated region
    $region66: #{tpu_custom_call.1} parent=1 // pred_check
      _
    $region67: #{tpu_custom_call.1} parent=1 // pred_check_branch
      %130 = sbr.rel (0) target = $region69
    $region68: #{tpu_custom_call.1} parent=1 // pred_region
      %131 = dma.done [#allocation12], 16
    $region69: #{tpu_custom_call.1} parent=1 // pred_fallthru
      _
    // Predicated region
    $region70: #{tpu_custom_call.1} parent=1 // pred_check
      _
    $region71: #{tpu_custom_call.1} parent=1 // pred_check_branch
      %133 = sbr.rel (0) target = $region73
    $region72: #{tpu_custom_call.1} parent=1 // pred_region
      %134 = dma.done [#allocation12], 16
    $region73: #{tpu_custom_call.1} parent=1 // pred_fallthru
      _
    // Predicated region
    $region74: #{tpu_custom_call.1} parent=1 // pred_check
      _
    $region75: #{tpu_custom_call.1} parent=1 // pred_check_branch
      %136 = sbr.rel (0) target = $region77
    $region76: #{tpu_custom_call.1} parent=1 // pred_region
      %137 = dma.done [#allocation15], 16
    $region77: #{tpu_custom_call.1} parent=1 // pred_fallthru
      _
    %v139 = vld [vmem:[#allocation2] sm:$0xf]
    %v140 = vld [vmem:[#allocation2 + $0x4] sm:$0xf]
    %v141 = vld [vmem:[#allocation5] sm:$0xf]
    %v142 = vld [vmem:[#allocation5 + $0x4] sm:$0xf]
    %v143 = vld [vmem:[#allocation7] sm:$0x1]
    %v145 = vlaneseq
    %v146 = vshrl.u32 %v145, 7
    %v147 = vsub.s32 0, %v146
    %v148 = vrot.slane %v143, %v147
    %v152 = vunpack.c.l.b16 %v139
    %v153 = vunpack.c.l.b16 %v140
    %v154 = vpack.c.b16 %v153, %v152
    %v157 = vunpack.c.l.b16 %v141
    %v158 = vunpack.c.l.b16 %v142
    %v159 = vpack.c.b16 %v158, %v157
    %vm161 = vcmask 130048
    %v163 = vsel %vm161, %v154, 0
    %165 = vmatprep.subr.bf16.mxu0 0
    %166 = vmatpush1.bf16.msra.mxu0 0
    %167 = vmatprep.subr.bf16.mxu0 0
    %168 = vmatpush1.bf16.msra.mxu0 0
    %169 = vmatprep.subr.bf16.mxu0 0
    %170 = vmatpush1.bf16.msra.mxu0 0
    %171 = vmatprep.subr.bf16.mxu0 0
    %172 = vmatpush1.bf16.msra.mxu0 0
    %173 = vmatprep.subr.bf16.mxu0 0
    %174 = vmatpush1.bf16.msra.mxu0 0
    %175 = vmatprep.subr.bf16.mxu0 0
    %176 = vmatpush1.bf16.msra.mxu0 0
    %177 = vmatprep.subr.bf16.mxu0 0
    %178 = vmatpush1.bf16.msra.mxu0 0
    %179 = vmatprep.subr.bf16.mxu0 0
    %180 = vmatpush1.bf16.msra.mxu0 %v159
    %181 = vmatprep.subr.bf16.mxu0 0
    %182 = vmatpush2.bf16.msra.mxu0 0
    %183 = vmatprep.subr.bf16.mxu0 0
    %184 = vmatpush2.bf16.msra.mxu0 0
    %185 = vmatprep.subr.bf16.mxu0 0
    %186 = vmatpush2.bf16.msra.mxu0 0
    %187 = vmatprep.subr.bf16.mxu0 0
    %188 = vmatpush2.bf16.msra.mxu0 0
    %189 = vmatprep.subr.bf16.mxu0 0
    %190 = vmatpush2.bf16.msra.mxu0 0
    %191 = vmatprep.subr.bf16.mxu0 0
    %192 = vmatpush2.bf16.msra.mxu0 0
    %193 = vmatprep.subr.bf16.mxu0 0
    %194 = vmatpush2.bf16.msra.mxu0 0
    %195 = vmatprep.subr.bf16.mxu0 0
    %196 = vmatpush2.bf16.msra.mxu0 0
    %197 = vmatprep.mubr.bf16.mxu0 0
    %198 = vmatmul.mubr.bf16.gmra.mxu0 %v163
    %v199 = vpop.f32.mrf.mxu0
    %v200 = vadd.f32 %v148, %v199
    %v201 = vpop.f32.mrf.mxu0
    %v202 = vpop.f32.mrf.mxu0
    %v203 = vadd.f32 %v148, %v202
    %v204 = vpop.f32.mrf.mxu0
    %205 = vdwg.mxu0
    %vm206 = vcmask 138368
    %v207 = vsel %vm206, %v200, -inf
    %v208 = vrot.slane %v207, 4
    %v209 = vmax.f32 %v207, %v208
    %v210 = vrot.slane %v209, 2
    %v211 = vmax.f32 %v209, %v210
    %v212 = vrot.slane %v211, 1
    %v213 = vmax.f32 %v211, %v212
    %v214 = vsel %vm206, %v203, -inf
    %v215 = vrot.slane %v214, 4
    %v216 = vmax.f32 %v214, %v215
    %v217 = vrot.slane %v216, 2
    %v218 = vmax.f32 %v216, %v217
    %v219 = vrot.slane %v218, 1
    %v220 = vmax.f32 %v218, %v219
    %v221 = vsub.f32 %v200, %v213
    %v222 = vsub.f32 %v203, %v220
    %v223 = vmul.f32 %v221, 1.442695
    %v224 = vpow.pop %v223
    %v225 = vmul.f32 %v222, 1.442695
    %v226 = vpow.pop %v225
    %v227 = vsel %vm206, %v224, 0.0
    %v228 = vrot.slane %v227, 4
    %v229 = vadd.f32 %v227, %v228
    %v230 = vrot.slane %v229, 2
    %v231 = vadd.f32 %v229, %v230
    %v232 = vrot.slane %v231, 1
    %v233 = vadd.f32 %v231, %v232
    %v234 = vsel %vm206, %v226, 0.0
    %v235 = vrot.slane %v234, 4
    %v236 = vadd.f32 %v234, %v235
    %v237 = vrot.slane %v236, 2
    %v238 = vadd.f32 %v236, %v237
    %v239 = vrot.slane %v238, 1
    %v240 = vadd.f32 %v238, %v239
    %v241 = vrcp.pop %v233
    %v242 = vrcp.pop %v240
    %244 = vset.pattern.permute.xlu0 16
    %245 = vperm.xlu0 %244, %v224
    %v246 = vpop.permute.xlu0 %245
    %249 = vset.pattern.permute.xlu0 16
    %250 = vperm.xlu0 %249, %v226
    %v251 = vpop.permute.xlu0 %250
    %v253 = vmul.f32 %v246, %v200
    %v254 = vmul.f32 %v251, %v203
    %v255 = vsel %vm161, %v253, 0.0
    %v256 = vrot.slane %v255, 4
    %v257 = vadd.f32 %v255, %v256
    %v258 = vrot.slane %v257, 2
    %v259 = vadd.f32 %v257, %v258
    %v260 = vrot.slane %v259, 1
    %v261 = vadd.f32 %v259, %v260
    %v262 = vsel %vm161, %v254, 0.0
    %v263 = vrot.slane %v262, 4
    %v264 = vadd.f32 %v262, %v263
    %v265 = vrot.slane %v264, 2
    %v266 = vadd.f32 %v264, %v265
    %v267 = vrot.slane %v266, 1
    %v268 = vadd.f32 %v266, %v267
    %270 = vset.pattern.permute.xlu0 16
    %271 = vperm.xlu0 %270, %v241
    %v272 = vpop.permute.xlu0 %271
    %275 = vset.pattern.permute.xlu0 16
    %276 = vperm.xlu0 %275, %v242
    %v277 = vpop.permute.xlu0 %276
    %v279 = vmul.f32 %v261, %v272
    %v280 = vmul.f32 %v268, %v277
    %v281 = vpack.c.bf16 %v279, %v279
    %v282 = vpack.c.bf16 %v280, %v280
    %v283 = vld [vmem:[#allocation8] sm:$0xf]
    %v284 = vld [vmem:[#allocation8 + $0x4] sm:$0xf]
    %v285 = vld [vmem:[#allocation10] sm:$0x1]
    %v287 = vlaneseq
    %v288 = vshrl.u32 %v287, 7
    %v289 = vsub.s32 0, %v288
    %v290 = vrot.slane %v285, %v289
    %v294 = vunpack.c.l.b16 %v281
    %v295 = vunpack.c.l.b16 %v282
    %vm296 = vcmask 1041409
    %v297 = vsel %vm296, %v295, %v294
    %v298 = vpack.c.b16 %v297, %v297
    %v301 = vunpack.c.l.b16 %v283
    %v302 = vunpack.c.l.b16 %v284
    %v303 = vpack.c.b16 %v302, %v301
    %v306 = vsel %vm161, %v298, 0
    %308 = vmatprep.subr.bf16.mxu0 0
    %309 = vmatpush1.bf16.msra.mxu0 0
    %310 = vmatprep.subr.bf16.mxu0 0
    %311 = vmatpush1.bf16.msra.mxu0 0
    %312 = vmatprep.subr.bf16.mxu0 0
    %313 = vmatpush1.bf16.msra.mxu0 0
    %314 = vmatprep.subr.bf16.mxu0 0
    %315 = vmatpush1.bf16.msra.mxu0 0
    %316 = vmatprep.subr.bf16.mxu0 0
    %317 = vmatpush1.bf16.msra.mxu0 0
    %318 = vmatprep.subr.bf16.mxu0 0
    %319 = vmatpush1.bf16.msra.mxu0 0
    %320 = vmatprep.subr.bf16.mxu0 0
    %321 = vmatpush1.bf16.msra.mxu0 0
    %322 = vmatprep.subr.bf16.mxu0 0
    %323 = vmatpush1.bf16.msra.mxu0 %v303
    %324 = vmatprep.subr.bf16.mxu0 0
    %325 = vmatpush2.bf16.msra.mxu0 0
    %326 = vmatprep.subr.bf16.mxu0 0
    %327 = vmatpush2.bf16.msra.mxu0 0
    %328 = vmatprep.subr.bf16.mxu0 0
    %329 = vmatpush2.bf16.msra.mxu0 0
    %330 = vmatprep.subr.bf16.mxu0 0
    %331 = vmatpush2.bf16.msra.mxu0 0
    %332 = vmatprep.subr.bf16.mxu0 0
    %333 = vmatpush2.bf16.msra.mxu0 0
    %334 = vmatprep.subr.bf16.mxu0 0
    %335 = vmatpush2.bf16.msra.mxu0 0
    %336 = vmatprep.subr.bf16.mxu0 0
    %337 = vmatpush2.bf16.msra.mxu0 0
    %338 = vmatprep.subr.bf16.mxu0 0
    %339 = vmatpush2.bf16.msra.mxu0 0
    %340 = vmatprep.mubr.bf16.mxu0 0
    %341 = vmatmul.mubr.bf16.gmra.mxu0 %v306
    %v342 = vpop.f32.mrf.mxu0
    %v343 = vadd.f32 %v290, %v342
    %v344 = vpop.f32.mrf.mxu0
    %v345 = vpop.f32.mrf.mxu0
    %v346 = vpop.f32.mrf.mxu0
    %347 = vdwg.mxu0
    %vm348 = vcmask 123904
    %v349 = vsel %vm348, %v343, 0.0
    %350 = vadd.xlane.f32.xlu0 %v349
    %v351 = vpop.xlane.xlu0 %350
    %v352 = vrcp.pop 16.0
    %v353 = vmul.f32 %v351, %v352
    %v354 = vsub.f32 %v343, %v353
    %v355 = vmul.f32 %v354, %v354
    %v356 = vsel %vm348, %v355, 0.0
    %357 = vadd.xlane.f32.xlu0 %v356
    %v358 = vpop.xlane.xlu0 %357
    %v359 = vmul.f32 %v358, %v352
    %v360 = vadd.f32 %v359, 1e-06
    %v361 = vrsqrt.pop %v360
    %v362 = vmul.f32 %v354, %v361
    %v363 = vld [vmem:[#allocation11] sm:$0x1]
    %v365 = vlaneseq
    %v366 = vshrl.u32 %v365, 7
    %v367 = vsub.s32 0, %v366
    %v368 = vrot.slane %v363, %v367
    %v370 = vmul.f32 %v362, %v368
    %v371 = vld [vmem:[#allocation13] sm:$0x1]
    %v373 = vlaneseq
    %v374 = vshrl.u32 %v373, 7
    %v375 = vsub.s32 0, %v374
    %v376 = vrot.slane %v371, %v375
    %v378 = vadd.f32 %v370, %v376
    %v379 = vpack.c.bf16 %v378, %v378
    %v380 = vld [vmem:[%s7] sm:$0xf]
    %v381 = vld [vmem:[%s7 + $0x4] sm:$0xf]
    %v382 = vld [vmem:[#allocation14] sm:$0x1]
    %v384 = vlaneseq
    %v385 = vshrl.u32 %v384, 7
    %v386 = vsub.s32 0, %v385
    %v387 = vrot.slane %v382, %v386
    %v391 = vunpack.c.l.b16 %v380
    %v392 = vunpack.c.l.b16 %v381
    %v393 = vpack.c.b16 %v392, %v391
    %v396 = vsel %vm161, %v379, 0
    %398 = vmatprep.subr.bf16.mxu0 0
    %399 = vmatpush1.bf16.msra.mxu0 0
    %400 = vmatprep.subr.bf16.mxu0 0
    %401 = vmatpush1.bf16.msra.mxu0 0
    %402 = vmatprep.subr.bf16.mxu0 0
    %403 = vmatpush1.bf16.msra.mxu0 0
    %404 = vmatprep.subr.bf16.mxu0 0
    %405 = vmatpush1.bf16.msra.mxu0 0
    %406 = vmatprep.subr.bf16.mxu0 0
    %407 = vmatpush1.bf16.msra.mxu0 0
    %408 = vmatprep.subr.bf16.mxu0 0
    %409 = vmatpush1.bf16.msra.mxu0 0
    %410 = vmatprep.subr.bf16.mxu0 0
    %411 = vmatpush1.bf16.msra.mxu0 0
    %412 = vmatprep.subr.bf16.mxu0 0
    %413 = vmatpush1.bf16.msra.mxu0 %v393
    %414 = vmatprep.subr.bf16.mxu0 0
    %415 = vmatpush2.bf16.msra.mxu0 0
    %416 = vmatprep.subr.bf16.mxu0 0
    %417 = vmatpush2.bf16.msra.mxu0 0
    %418 = vmatprep.subr.bf16.mxu0 0
    %419 = vmatpush2.bf16.msra.mxu0 0
    %420 = vmatprep.subr.bf16.mxu0 0
    %421 = vmatpush2.bf16.msra.mxu0 0
    %422 = vmatprep.subr.bf16.mxu0 0
    %423 = vmatpush2.bf16.msra.mxu0 0
    %424 = vmatprep.subr.bf16.mxu0 0
    %425 = vmatpush2.bf16.msra.mxu0 0
    %426 = vmatprep.subr.bf16.mxu0 0
    %427 = vmatpush2.bf16.msra.mxu0 0
    %428 = vmatprep.subr.bf16.mxu0 0
    %429 = vmatpush2.bf16.msra.mxu0 0
    %430 = vmatprep.mubr.bf16.mxu0 0
    %431 = vmatmul.mubr.bf16.gmra.mxu0 %v396
    %v432 = vpop.f32.mrf.mxu0
    %v433 = vadd.f32 %v387, %v432
    %v434 = vpop.f32.mrf.mxu0
    %v435 = vpop.f32.mrf.mxu0
    %v436 = vpop.f32.mrf.mxu0
    %437 = vdwg.mxu0
    %v438 = vmax.f32 %v433, 0.0
    %v439 = vpack.c.bf16 %v438, %v438
    %v440 = vld [vmem:[%s9] sm:$0xf]
    %v441 = vld [vmem:[%s9 + $0x4] sm:$0xf]
    %v442 = vld [vmem:[%s10] sm:$0x1]
    %v444 = vlaneseq
    %v445 = vshrl.u32 %v444, 7
    %v446 = vsub.s32 0, %v445
    %v447 = vrot.slane %v442, %v446
    %v451 = vunpack.c.l.b16 %v440
    %v452 = vunpack.c.l.b16 %v441
    %v453 = vpack.c.b16 %v452, %v451
    %v456 = vsel %vm161, %v439, 0
    %458 = vmatprep.subr.bf16.mxu0 0
    %459 = vmatpush1.bf16.msra.mxu0 0
    %460 = vmatprep.subr.bf16.mxu0 0
    %461 = vmatpush1.bf16.msra.mxu0 0
    %462 = vmatprep.subr.bf16.mxu0 0
    %463 = vmatpush1.bf16.msra.mxu0 0
    %464 = vmatprep.subr.bf16.mxu0 0
    %465 = vmatpush1.bf16.msra.mxu0 0
    %466 = vmatprep.subr.bf16.mxu0 0
    %467 = vmatpush1.bf16.msra.mxu0 0
    %468 = vmatprep.subr.bf16.mxu0 0
    %469 = vmatpush1.bf16.msra.mxu0 0
    %470 = vmatprep.subr.bf16.mxu0 0
    %471 = vmatpush1.bf16.msra.mxu0 0
    %472 = vmatprep.subr.bf16.mxu0 0
    %473 = vmatpush1.bf16.msra.mxu0 %v453
    %474 = vmatprep.subr.bf16.mxu0 0
    %475 = vmatpush2.bf16.msra.mxu0 0
    %476 = vmatprep.subr.bf16.mxu0 0
    %477 = vmatpush2.bf16.msra.mxu0 0
    %478 = vmatprep.subr.bf16.mxu0 0
    %479 = vmatpush2.bf16.msra.mxu0 0
    %480 = vmatprep.subr.bf16.mxu0 0
    %481 = vmatpush2.bf16.msra.mxu0 0
    %482 = vmatprep.subr.bf16.mxu0 0
    %483 = vmatpush2.bf16.msra.mxu0 0
    %484 = vmatprep.subr.bf16.mxu0 0
    %485 = vmatpush2.bf16.msra.mxu0 0
    %486 = vmatprep.subr.bf16.mxu0 0
    %487 = vmatpush2.bf16.msra.mxu0 0
    %488 = vmatprep.subr.bf16.mxu0 0
    %489 = vmatpush2.bf16.msra.mxu0 0
    %490 = vmatprep.mubr.bf16.mxu0 0
    %491 = vmatmul.mubr.bf16.gmra.mxu0 %v456
    %v492 = vpop.f32.mrf.mxu0
    %v493 = vadd.f32 %v447, %v492
    %v494 = vpop.f32.mrf.mxu0
    %v495 = vpop.f32.mrf.mxu0
    %v496 = vpop.f32.mrf.mxu0
    %497 = vdwg.mxu0
    %v498 = vadd.f32 %v493, %v343
    %499 = vst.msk [vmem:[#allocation16] sm:$0x3] %vm348, %v498
    // Predicated region
    $region78: #{tpu_custom_call.1} parent=1 // pred_check
      _
    $region79: #{tpu_custom_call.1} parent=1 // pred_check_branch
      %501 = sbr.rel (0) target = $region81
    $region80: #{tpu_custom_call.1} parent=1 // pred_region
      %s503 = ssub.s32 32, 32
      %504 = vsyncadd [#allocation4], %s503
      %s506 = sshll.u32 [#allocation16], 4
      %s507 = int_to_ptr.vmem [resolvable:$true] %s506
      %509 = dma.vmem_to_hbm [thread:$0]  %s507, 32, %s11, [#allocation4]
    $region81: #{tpu_custom_call.1} parent=1 // pred_fallthru
      _
    // Predicated region
    $region82: #{tpu_custom_call.1} parent=1 // pred_check
      _
    $region83: #{tpu_custom_call.1} parent=1 // pred_check_branch
      %511 = sbr.rel (0) target = $region85
    $region84: #{tpu_custom_call.1} parent=1 // pred_region
      %512 = dma.done [#allocation4], 32
    $region85: #{tpu_custom_call.1} parent=1 // pred_fallthru
      _
    %513 = vsyncpa [#allocation3], 1
    %514 = vsyncpa [#allocation6], 1
    %515 = vsyncpa [#allocation9], 1
    %516 = vsyncpa [#allocation12], 1
    %517 = vsyncpa [#allocation15], 1
    %518 = vsyncpa [#allocation4], 1

</llo_original>
